<compile_context>
chip_gen: v5e
topology: v5e:2x2
jax: 0.10.0
libtpu: 0.0.40
codegen_flags: <defaults>
</compile_context>

<pallas_src>
import functools

import jax
import jax.numpy as jnp
from jax.experimental import pallas as pl
from jax.experimental.pallas import tpu as pltpu

_SUBLANE = 8
_TB_TARGET = 1024  # rows per grid step (sweep 1024-2048 at large N)


def _round_up(x, m):
    return ((x + m - 1) // m) * m


def _link_predictor_kernel(*refs, num_layers):
    """Fused LinkPredictor forward for one batch tile of rows.

    refs = (xi_ref, xj_ref, w0, b0, w1, b1, ..., out_ref)
    Weights are pre-transposed to [c_in, c_out] in the wrapper (no in-kernel
    transpose); biases are [1, c_out].
    """
    xi_ref, xj_ref = refs[0], refs[1]
    out_ref = refs[-1]
    wb = refs[2:-1]

    # x = x_i * x_j   (VPU elementwise), accumulate in f32 throughout.
    x = (xi_ref[...] * xj_ref[...]).astype(jnp.float32)

    # Unrolled layer stack: Linear (+ ReLU for all but the last layer).
    for li in range(num_layers):
        w = wb[2 * li][...]        # [c_in, c_out]
        b = wb[2 * li + 1][...]    # [1, c_out]
        # Default MXU precision (single pass), f32 accumulation.
        x = jnp.dot(x, w, preferred_element_type=jnp.float32) + b
        if li < num_layers - 1:
            x = jnp.maximum(x, 0.0)
            # TODO(synk): dropout (training=True) is not implemented in-kernel;
            # this matches eval-mode semantics (dropout == identity).

    # sigmoid = 1 / (1 + exp(-x)): exp on the EUP, approx reciprocal also on
    # the EUP slot (frees the VALU; error ~1e-4, negligible after sigmoid).
    x = pl.reciprocal(1.0 + jnp.exp(-x), approx=True)
    out_ref[...] = x.astype(out_ref.dtype)


def link_predictor_forward(x_i, x_j, params, dropout_p=0.5, training=False):
    """LinkPredictor.forward as a single fused Pallas kernel.

    params: list of (w, b) in PyTorch nn.Linear convention, w: [c_out, c_in],
    b: [c_out].
    """
    # TODO(synk): in-kernel dropout (pltpu.prng_seed / prng_random_bits) not
    # implemented; reject training mode instead of silently diverging.
    assert not training, "training-mode dropout not implemented in this kernel"
    assert x_i.shape == x_j.shape and x_i.ndim == 2
    n, in_ch = x_i.shape
    num_layers = len(params)
    out_ch = params[-1][0].shape[0]

    # ---- batch tile selection ----------------------------------------------
    # Target large tiles (per-step overhead ~0.35us), but keep >=2 grid steps
    # when possible so v7x can shard the "parallel" axis across its 2 TCs.
    tb = min(_TB_TARGET, _round_up(pl.cdiv(n, 2), _SUBLANE))
    # Keep the double-buffered input blocks comfortably inside the default
    # scoped-VMEM budget (~6 MiB for the two streamed inputs).
    in_row_bytes = 2 * in_ch * x_i.dtype.itemsize          # x_i row + x_j row
    vmem_rows = ((6 << 20) // max(2 * in_row_bytes, 1)) // _SUBLANE * _SUBLANE
    tb = max(_SUBLANE, min(tb, max(vmem_rows, _SUBLANE)))
    if tb >= n:
        tb = n  # single full-extent block (full-dim exception covers any n)
    grid = (pl.cdiv(n, tb),)

    # Pre-transpose weights to [c_in, c_out] at trace time (tiny, one-off);
    # weights/biases use the same block every grid step -> stay VMEM-resident.
    wb_args, wb_specs = [], []
    for w, b in params:
        c_out, c_in = w.shape
        wt = w.T                       # [c_in, c_out]
        bp = b.reshape(1, c_out)       # [1, c_out]
        wb_args += [wt, bp]
        wb_specs += [
            pl.BlockSpec(wt.shape, lambda i: (0, 0)),
            pl.BlockSpec(bp.shape, lambda i: (0, 0)),
        ]

    kernel = functools.partial(_link_predictor_kernel, num_layers=num_layers)

    out = pl.pallas_call(
        kernel,
        out_shape=jax.ShapeDtypeStruct((n, out_ch), x_i.dtype),
        grid=grid,
        in_specs=[
            # Last block dim == full array dim -> no lane padding needed.
            pl.BlockSpec((tb, in_ch), lambda i: (i, 0)),
            pl.BlockSpec((tb, in_ch), lambda i: (i, 0)),
        ] + wb_specs,
        out_specs=pl.BlockSpec((tb, out_ch), lambda i: (i, 0)),
        compiler_params=pltpu.CompilerParams(
            dimension_semantics=("parallel",),
        ),
    )(x_i, x_j, *wb_args)

    return out


def make_link_predictor_params(key, in_channels, hidden_channels, out_channels,
                               num_layers):
    """Deterministic params mirroring the PyTorch module's Linear shapes."""
    dims = [in_channels] + [hidden_channels] * (num_layers - 1) + [out_channels]
    params = []
    for li in range(num_layers):
        c_in, c_out = dims[li], dims[li + 1]
        key, kw, kb = jax.random.split(key, 3)
        bound = 1.0 / jnp.sqrt(jnp.float32(c_in))  # nn.Linear-style uniform init
        w = jax.random.uniform(kw, (c_out, c_in), jnp.float32, -bound, bound)
        b = jax.random.uniform(kb, (c_out,), jnp.float32, -bound, bound)
        params.append((w, b))
    return params


if __name__ == "__main__":
    key = jax.random.PRNGKey(0)
    k_i, k_j, k_p = jax.random.split(key, 3)

    # Small shapes consistent with LinkPredictor(in, hidden, out, L, p).
    B = 32
    in_channels, hidden_channels, out_channels = 16, 32, 1
    num_layers, dropout = 3, 0.5

    x_i = jax.random.normal(k_i, (B, in_channels), jnp.float32)
    x_j = jax.random.normal(k_j, (B, in_channels), jnp.float32)
    params = make_link_predictor_params(
        k_p, in_channels, hidden_channels, out_channels, num_layers
    )

    out = link_predictor_forward(x_i, x_j, params, dropout_p=dropout,
                                 training=False)
    out = jax.block_until_ready(out)

    # Pure-JAX reference (same default matmul precision as the kernel).
    ref = x_i * x_j
    for li, (w, b) in enumerate(params):
        ref = jnp.dot(ref, w.T) + b
        if li != num_layers - 1:
            ref = jnp.maximum(ref, 0.0)
    ref = 1.0 / (1.0 + jnp.exp(-ref))

    assert out.shape == (B, out_channels)
    # Tolerance covers default (non-HIGHEST) MXU precision and the approximate
    # EUP reciprocal in the in-kernel sigmoid.
    assert jnp.allclose(out, ref, atol=1e-2, rtol=1e-2), (
        float(jnp.max(jnp.abs(out - ref))))

    print("KERNEL_OK")
</pallas_src>

<mosaic_0001>
module attributes {stable_mosaic.version = 11 : i64} {
  func.func @_link_predictor_kernel(%arg0: i32, %arg1: memref<16x16xf32, #tpu.memory_space<vmem>>, %arg2: memref<16x16xf32, #tpu.memory_space<vmem>>, %arg3: memref<16x32xf32, #tpu.memory_space<vmem>>, %arg4: memref<1x32xf32, #tpu.memory_space<vmem>>, %arg5: memref<32x32xf32, #tpu.memory_space<vmem>>, %arg6: memref<1x32xf32, #tpu.memory_space<vmem>>, %arg7: memref<32x1xf32, #tpu.memory_space<vmem>>, %arg8: memref<1x1xf32, #tpu.memory_space<vmem>>, %arg9: memref<16x1xf32, #tpu.memory_space<vmem>>) attributes {dimension_semantics = [#tpu.dimension_semantics<parallel>], iteration_bounds = array<i64: 2>, scalar_prefetch = 0 : i64, scratch_operands = 0 : i64, tpu.core_type = #tpu.core_type<tc>, window_params = [{transform_indices = @transform_0, window_bounds = array<i64: 16, 16>}, {transform_indices = @transform_1, window_bounds = array<i64: 16, 16>}, {pipeline_mode = #tpu.pipeline_mode<synchronous>, transform_indices = @transform_2, window_bounds = array<i64: 16, 32>}, {pipeline_mode = #tpu.pipeline_mode<synchronous>, transform_indices = @transform_3, window_bounds = array<i64: 1, 32>}, {pipeline_mode = #tpu.pipeline_mode<synchronous>, transform_indices = @transform_4, window_bounds = array<i64: 32, 32>}, {pipeline_mode = #tpu.pipeline_mode<synchronous>, transform_indices = @transform_5, window_bounds = array<i64: 1, 32>}, {pipeline_mode = #tpu.pipeline_mode<synchronous>, transform_indices = @transform_6, window_bounds = array<i64: 32, 1>}, {pipeline_mode = #tpu.pipeline_mode<synchronous>, transform_indices = @transform_7, window_bounds = array<i64: 1, 1>}, {transform_indices = @transform_8, window_bounds = array<i64: 16, 1>}]} {
    %c0 = arith.constant 0 : index
    %c0_0 = arith.constant 0 : index
    %0 = vector.load %arg1[%c0, %c0_0] : memref<16x16xf32, #tpu.memory_space<vmem>>, vector<16x16xf32>
    %c0_1 = arith.constant 0 : index
    %c0_2 = arith.constant 0 : index
    %1 = vector.load %arg2[%c0_1, %c0_2] : memref<16x16xf32, #tpu.memory_space<vmem>>, vector<16x16xf32>
    %2 = arith.mulf %0, %1 : vector<16x16xf32>
    %c0_3 = arith.constant 0 : index
    %c0_4 = arith.constant 0 : index
    %3 = vector.load %arg3[%c0_3, %c0_4] : memref<16x32xf32, #tpu.memory_space<vmem>>, vector<16x32xf32>
    %c0_5 = arith.constant 0 : index
    %c0_6 = arith.constant 0 : index
    %4 = vector.load %arg4[%c0_5, %c0_6] : memref<1x32xf32, #tpu.memory_space<vmem>>, vector<1x32xf32>
    %cst = arith.constant dense<0.000000e+00> : vector<16x32xf32>
    %5 = tpu.matmul %2, %3, %cst {dimension_numbers = #tpu.dot_dimension_numbers<[1], [0], [0], [1], [0, 0, 1, 1], [], []>} : vector<16x16xf32>, vector<16x32xf32>, vector<16x32xf32> -> vector<16x32xf32>
    %6 = vector.broadcast %4 : vector<1x32xf32> to vector<16x32xf32>
    %7 = arith.addf %5, %6 : vector<16x32xf32>
    %cst_7 = arith.constant 0.000000e+00 : f32
    %8 = vector.broadcast %cst_7 : f32 to vector<16x32xf32>
    %9 = arith.maximumf %7, %8 : vector<16x32xf32>
    %c0_8 = arith.constant 0 : index
    %c0_9 = arith.constant 0 : index
    %10 = vector.load %arg5[%c0_8, %c0_9] : memref<32x32xf32, #tpu.memory_space<vmem>>, vector<32x32xf32>
    %c0_10 = arith.constant 0 : index
    %c0_11 = arith.constant 0 : index
    %11 = vector.load %arg6[%c0_10, %c0_11] : memref<1x32xf32, #tpu.memory_space<vmem>>, vector<1x32xf32>
    %cst_12 = arith.constant dense<0.000000e+00> : vector<16x32xf32>
    %12 = tpu.matmul %9, %10, %cst_12 {dimension_numbers = #tpu.dot_dimension_numbers<[1], [0], [0], [1], [0, 0, 1, 1], [], []>} : vector<16x32xf32>, vector<32x32xf32>, vector<16x32xf32> -> vector<16x32xf32>
    %13 = vector.broadcast %11 : vector<1x32xf32> to vector<16x32xf32>
    %14 = arith.addf %12, %13 : vector<16x32xf32>
    %cst_13 = arith.constant 0.000000e+00 : f32
    %15 = vector.broadcast %cst_13 : f32 to vector<16x32xf32>
    %16 = arith.maximumf %14, %15 : vector<16x32xf32>
    %c0_14 = arith.constant 0 : index
    %c0_15 = arith.constant 0 : index
    %17 = vector.load %arg7[%c0_14, %c0_15] : memref<32x1xf32, #tpu.memory_space<vmem>>, vector<32x1xf32>
    %c0_16 = arith.constant 0 : index
    %c0_17 = arith.constant 0 : index
    %18 = vector.load %arg8[%c0_16, %c0_17] : memref<1x1xf32, #tpu.memory_space<vmem>>, vector<1x1xf32>
    %cst_18 = arith.constant dense<0.000000e+00> : vector<16x1xf32>
    %19 = tpu.matmul %16, %17, %cst_18 {dimension_numbers = #tpu.dot_dimension_numbers<[1], [0], [0], [1], [0, 0, 1, 1], [], []>} : vector<16x32xf32>, vector<32x1xf32>, vector<16x1xf32> -> vector<16x1xf32>
    %20 = vector.broadcast %18 : vector<1x1xf32> to vector<16x1xf32>
    %21 = arith.addf %19, %20 : vector<16x1xf32>
    %cst_19 = arith.constant 0.000000e+00 : f32
    %22 = vector.broadcast %cst_19 : f32 to vector<16x1xf32>
    %23 = arith.subf %22, %21 : vector<16x1xf32>
    %24 = math.exp %23 : vector<16x1xf32>
    %cst_20 = arith.constant 1.000000e+00 : f32
    %25 = vector.broadcast %cst_20 : f32 to vector<16x1xf32>
    %26 = arith.addf %25, %24 : vector<16x1xf32>
    %27 = tpu.reciprocal %26 {approx = true} : vector<16x1xf32> -> vector<16x1xf32>
    %c0_21 = arith.constant 0 : index
    %c0_22 = arith.constant 0 : index
    %28 = vector.load %arg9[%c0_21, %c0_22] : memref<16x1xf32, #tpu.memory_space<vmem>>, vector<16x1xf32>
    tpu.vector_store %arg9[%c0_21, %c0_22], %27 {strides = array<i32>} : memref<16x1xf32, #tpu.memory_space<vmem>>, vector<16x1xf32>,
    return
  }
  func.func @transform_0(%arg0: i32) -> (i32, i32) {
    %c0_i32 = arith.constant 0 : i32
    %c0_i32_0 = arith.constant 0 : i32
    return %arg0, %c0_i32 : i32, i32
  }
  func.func @transform_1(%arg0: i32) -> (i32, i32) {
    %c0_i32 = arith.constant 0 : i32
    %c0_i32_0 = arith.constant 0 : i32
    return %arg0, %c0_i32 : i32, i32
  }
  func.func @transform_2(%arg0: i32) -> (i32, i32) {
    %c0_i32 = arith.constant 0 : i32
    %c0_i32_0 = arith.constant 0 : i32
    %c0_i32_1 = arith.constant 0 : i32
    return %c0_i32, %c0_i32_0 : i32, i32
  }
  func.func @transform_3(%arg0: i32) -> (i32, i32) {
    %c0_i32 = arith.constant 0 : i32
    %c0_i32_0 = arith.constant 0 : i32
    %c0_i32_1 = arith.constant 0 : i32
    return %c0_i32, %c0_i32_0 : i32, i32
  }
  func.func @transform_4(%arg0: i32) -> (i32, i32) {
    %c0_i32 = arith.constant 0 : i32
    %c0_i32_0 = arith.constant 0 : i32
    %c0_i32_1 = arith.constant 0 : i32
    return %c0_i32, %c0_i32_0 : i32, i32
  }
  func.func @transform_5(%arg0: i32) -> (i32, i32) {
    %c0_i32 = arith.constant 0 : i32
    %c0_i32_0 = arith.constant 0 : i32
    %c0_i32_1 = arith.constant 0 : i32
    return %c0_i32, %c0_i32_0 : i32, i32
  }
  func.func @transform_6(%arg0: i32) -> (i32, i32) {
    %c0_i32 = arith.constant 0 : i32
    %c0_i32_0 = arith.constant 0 : i32
    %c0_i32_1 = arith.constant 0 : i32
    return %c0_i32, %c0_i32_0 : i32, i32
  }
  func.func @transform_7(%arg0: i32) -> (i32, i32) {
    %c0_i32 = arith.constant 0 : i32
    %c0_i32_0 = arith.constant 0 : i32
    %c0_i32_1 = arith.constant 0 : i32
    return %c0_i32, %c0_i32_0 : i32, i32
  }
  func.func @transform_8(%arg0: i32) -> (i32, i32) {
    %c0_i32 = arith.constant 0 : i32
    %c0_i32_0 = arith.constant 0 : i32
    return %arg0, %c0_i32 : i32, i32
  }
}

</mosaic_0001>

<llo_original>
// kernel: tpu_custom_call.1
$region0: #{tpu_custom_call.1}
  #allocation0 [shape = 'u32[]', space=smem, size = 0x4, offset = 0x4, fixed_abs, tag = 'smem constant byte address 0x4 - core index']
  #allocation1 [shape = 'u32[72,128]{1,0:T(1,128)}', space=vmem, size = 0x9000, scoped, tag = 'internal scratch']
  #allocation2 [shape = 'f32[1,1]{1,0:T(1,128)S(1)}', space=vmem, size = 0x200, scoped, tag = 'scoped memory for tpu_custom_call.1']
  %s0 = inlined_call_operand.vmem [shape: f32[32,16], index: 0, kind: input, shape index: {}]
  %s1 = inlined_call_operand.vmem [shape: f32[32,16], index: 1, kind: input, shape index: {}]
  %s2 = inlined_call_operand.vmem [shape: f32[16,32], index: 2, kind: input, shape index: {}]
  %s3 = inlined_call_operand.vmem [shape: f32[1,32], index: 3, kind: input, shape index: {}]
  %s4 = inlined_call_operand.vmem [shape: f32[32,32], index: 4, kind: input, shape index: {}]
  %s5 = inlined_call_operand.vmem [shape: f32[1,32], index: 5, kind: input, shape index: {}]
  %s6 = inlined_call_operand.vmem [shape: f32[32,1], index: 6, kind: input, shape index: {}]
  %s7 = inlined_call_operand.<no memory space> [shape: f32[1,1], index: 7, kind: input, shape index: {}]
  %s8 = inlined_call_operand.vmem [shape: f32[32,1], index: 8, kind: output, shape index: {}]
  %s9 = sld [smem:[#allocation0]]
  $region65: #{tpu_custom_call.1} parent=0
    _
  %s11 = ssub.s32 1, %s9
  %s12 = scalar_select 0, %s11, %s9
  %v13 = vstv %s7
  %14 = vst [vmem:[#allocation2] sm:$0x1] %v13
  loop: start=0, step=1, limit=4
  $region2: #{tpu_custom_call.1} parent=0 // loop_pre_header
    _
  $region3: #{tpu_custom_call.1} parent=0 // loop_header
    %s16 = sphi 0, %s20
    %p17 = scmp.ge.s32.totalorder %s16, 4
    %s26 = sphi 0, %s28
    %s29 = sphi 0, %s26
    %s30 = sphi 0, %s29
    %s46 = sphi 0, %s30
    %s52 = sphi 0, %s54
    %s55 = sphi 0, %s52
    %s56 = sphi 0, %s55
    %s72 = sphi 0, %s56
    %s76 = sphi 0, %s76
    %s78 = sphi 0, %s76
    %s79 = sphi 0, %s78
    %s93 = sphi 0, %s79
    %s97 = sphi 0, %s97
    %s99 = sphi 0, %s97
    %s100 = sphi 0, %s99
    %s114 = sphi 0, %s100
    %s118 = sphi 0, %s118
    %s120 = sphi 0, %s118
    %s121 = sphi 0, %s120
    %s135 = sphi 0, %s121
    %s139 = sphi 0, %s139
    %s141 = sphi 0, %s139
    %s142 = sphi 0, %s141
    %s156 = sphi 0, %s142
    %s160 = sphi 0, %s160
    %s162 = sphi 0, %s160
    %s163 = sphi 0, %s162
    %s177 = sphi 0, %s163
    %s181 = sphi 0, %s181
    %s183 = sphi 0, %s181
    %s184 = sphi 0, %s183
    %s198 = sphi 0, %s184
    %s204 = sphi 0, %s206
    %s207 = sphi 0, %s204
    %s208 = sphi 0, %s207
    %s224 = sphi 0, %s208
  $region4: #{tpu_custom_call.1} parent=0 // loop_header_branch
    %19 = sbr.rel (%p17) target = $region8
  $region5: #{tpu_custom_call.1} parent=0 // loop_body
    %s21 = ssub.s32 %s16, 1
    %s22 = ssub.s32 %s16, 2
    %s23 = sadd.s32 %s16, 1
    %s24 = ssub.s32 %s16, %s23
    %p25 = scmp.eq.s32.totalorder %s24, 0
    %s27 = sadd.s32 %s26, 1
    %s28 = scalar_select %p25, %s26, %s27
    %p31 = pneg %p25
    %p32 = scmp.eq.s32.totalorder %s16, 1
    %p33 = por %p31, %p32
    %p34 = scmp.ne.s32.totalorder %s26, %s29
    %p35 = scmp.eq.s32.totalorder %s16, 0
    %p36 = por %p34, %p35
    %p37 = scmp.ne.s32.totalorder %s26, %s29
    %p38 = scmp.eq.s32.totalorder %s21, 1
    %p39 = por %p37, %p38
    %p40 = scmp.ne.s32.totalorder %s29, %s30
    %p41 = scmp.eq.s32.totalorder %s21, 0
    %p42 = por %p40, %p41
    %p43 = scmp.ne.s32.totalorder %s29, %s30
    %p44 = scmp.eq.s32.totalorder %s22, 1
    %p45 = por %p43, %p44
    %p47 = scmp.ne.s32.totalorder %s30, %s46
    %p48 = scmp.eq.s32.totalorder %s22, 0
    %p49 = por %p47, %p48
    %s50 = ssub.s32 %s16, %s23
    %p51 = scmp.eq.s32.totalorder %s50, 0
    %s53 = sadd.s32 %s52, 1
    %s54 = scalar_select %p51, %s52, %s53
    %p57 = pneg %p51
    %p58 = scmp.eq.s32.totalorder %s16, 1
    %p59 = por %p57, %p58
    %p60 = scmp.ne.s32.totalorder %s52, %s55
    %p61 = scmp.eq.s32.totalorder %s16, 0
    %p62 = por %p60, %p61
    %p63 = scmp.ne.s32.totalorder %s52, %s55
    %p64 = scmp.eq.s32.totalorder %s21, 1
    %p65 = por %p63, %p64
    %p66 = scmp.ne.s32.totalorder %s55, %s56
    %p67 = scmp.eq.s32.totalorder %s21, 0
    %p68 = por %p66, %p67
    %p69 = scmp.ne.s32.totalorder %s55, %s56
    %p70 = scmp.eq.s32.totalorder %s22, 1
    %p71 = por %p69, %p70
    %p73 = scmp.ne.s32.totalorder %s56, %s72
    %p74 = scmp.eq.s32.totalorder %s22, 0
    %p75 = por %p73, %p74
    %s77 = sadd.s32 %s76, 1
    %p80 = scmp.eq.s32.totalorder %s16, 1
    %p81 = scmp.ne.s32.totalorder %s76, %s78
    %p82 = scmp.eq.s32.totalorder %s16, 0
    %p83 = por %p81, %p82
    %p84 = scmp.ne.s32.totalorder %s76, %s78
    %p85 = scmp.eq.s32.totalorder %s21, 1
    %p86 = por %p84, %p85
    %p87 = scmp.ne.s32.totalorder %s78, %s79
    %p88 = scmp.eq.s32.totalorder %s21, 0
    %p89 = por %p87, %p88
    %p90 = scmp.ne.s32.totalorder %s78, %s79
    %p91 = scmp.eq.s32.totalorder %s22, 1
    %p92 = por %p90, %p91
    %p94 = scmp.ne.s32.totalorder %s79, %s93
    %p95 = scmp.eq.s32.totalorder %s22, 0
    %p96 = por %p94, %p95
    %s98 = sadd.s32 %s97, 1
    %p101 = scmp.eq.s32.totalorder %s16, 1
    %p102 = scmp.ne.s32.totalorder %s97, %s99
    %p103 = scmp.eq.s32.totalorder %s16, 0
    %p104 = por %p102, %p103
    %p105 = scmp.ne.s32.totalorder %s97, %s99
    %p106 = scmp.eq.s32.totalorder %s21, 1
    %p107 = por %p105, %p106
    %p108 = scmp.ne.s32.totalorder %s99, %s100
    %p109 = scmp.eq.s32.totalorder %s21, 0
    %p110 = por %p108, %p109
    %p111 = scmp.ne.s32.totalorder %s99, %s100
    %p112 = scmp.eq.s32.totalorder %s22, 1
    %p113 = por %p111, %p112
    %p115 = scmp.ne.s32.totalorder %s100, %s114
    %p116 = scmp.eq.s32.totalorder %s22, 0
    %p117 = por %p115, %p116
    %s119 = sadd.s32 %s118, 1
    %p122 = scmp.eq.s32.totalorder %s16, 1
    %p123 = scmp.ne.s32.totalorder %s118, %s120
    %p124 = scmp.eq.s32.totalorder %s16, 0
    %p125 = por %p123, %p124
    %p126 = scmp.ne.s32.totalorder %s118, %s120
    %p127 = scmp.eq.s32.totalorder %s21, 1
    %p128 = por %p126, %p127
    %p129 = scmp.ne.s32.totalorder %s120, %s121
    %p130 = scmp.eq.s32.totalorder %s21, 0
    %p131 = por %p129, %p130
    %p132 = scmp.ne.s32.totalorder %s120, %s121
    %p133 = scmp.eq.s32.totalorder %s22, 1
    %p134 = por %p132, %p133
    %p136 = scmp.ne.s32.totalorder %s121, %s135
    %p137 = scmp.eq.s32.totalorder %s22, 0
    %p138 = por %p136, %p137
    %s140 = sadd.s32 %s139, 1
    %p143 = scmp.eq.s32.totalorder %s16, 1
    %p144 = scmp.ne.s32.totalorder %s139, %s141
    %p145 = scmp.eq.s32.totalorder %s16, 0
    %p146 = por %p144, %p145
    %p147 = scmp.ne.s32.totalorder %s139, %s141
    %p148 = scmp.eq.s32.totalorder %s21, 1
    %p149 = por %p147, %p148
    %p150 = scmp.ne.s32.totalorder %s141, %s142
    %p151 = scmp.eq.s32.totalorder %s21, 0
    %p152 = por %p150, %p151
    %p153 = scmp.ne.s32.totalorder %s141, %s142
    %p154 = scmp.eq.s32.totalorder %s22, 1
    %p155 = por %p153, %p154
    %p157 = scmp.ne.s32.totalorder %s142, %s156
    %p158 = scmp.eq.s32.totalorder %s22, 0
    %p159 = por %p157, %p158
    %s161 = sadd.s32 %s160, 1
    %p164 = scmp.eq.s32.totalorder %s16, 1
    %p165 = scmp.ne.s32.totalorder %s160, %s162
    %p166 = scmp.eq.s32.totalorder %s16, 0
    %p167 = por %p165, %p166
    %p168 = scmp.ne.s32.totalorder %s160, %s162
    %p169 = scmp.eq.s32.totalorder %s21, 1
    %p170 = por %p168, %p169
    %p171 = scmp.ne.s32.totalorder %s162, %s163
    %p172 = scmp.eq.s32.totalorder %s21, 0
    %p173 = por %p171, %p172
    %p174 = scmp.ne.s32.totalorder %s162, %s163
    %p175 = scmp.eq.s32.totalorder %s22, 1
    %p176 = por %p174, %p175
    %p178 = scmp.ne.s32.totalorder %s163, %s177
    %p179 = scmp.eq.s32.totalorder %s22, 0
    %p180 = por %p178, %p179
    %s182 = sadd.s32 %s181, 1
    %p185 = scmp.eq.s32.totalorder %s16, 1
    %p186 = scmp.ne.s32.totalorder %s181, %s183
    %p187 = scmp.eq.s32.totalorder %s16, 0
    %p188 = por %p186, %p187
    %p189 = scmp.ne.s32.totalorder %s181, %s183
    %p190 = scmp.eq.s32.totalorder %s21, 1
    %p191 = por %p189, %p190
    %p192 = scmp.ne.s32.totalorder %s183, %s184
    %p193 = scmp.eq.s32.totalorder %s21, 0
    %p194 = por %p192, %p193
    %p195 = scmp.ne.s32.totalorder %s183, %s184
    %p196 = scmp.eq.s32.totalorder %s22, 1
    %p197 = por %p195, %p196
    %p199 = scmp.ne.s32.totalorder %s184, %s198
    %p200 = scmp.eq.s32.totalorder %s22, 0
    %p201 = por %p199, %p200
    %s202 = ssub.s32 %s16, %s23
    %p203 = scmp.eq.s32.totalorder %s202, 0
    %s205 = sadd.s32 %s204, 1
    %s206 = scalar_select %p203, %s204, %s205
    %p209 = pneg %p203
    %p210 = scmp.eq.s32.totalorder %s16, 1
    %p211 = por %p209, %p210
    %p212 = scmp.ne.s32.totalorder %s204, %s207
    %p213 = scmp.eq.s32.totalorder %s16, 0
    %p214 = por %p212, %p213
    %p215 = scmp.ne.s32.totalorder %s204, %s207
    %p216 = scmp.eq.s32.totalorder %s21, 1
    %p217 = por %p215, %p216
    %p218 = scmp.ne.s32.totalorder %s207, %s208
    %p219 = scmp.eq.s32.totalorder %s21, 0
    %p220 = por %p218, %p219
    %p221 = scmp.ne.s32.totalorder %s207, %s208
    %p222 = scmp.eq.s32.totalorder %s22, 1
    %p223 = por %p221, %p222
    %p225 = scmp.ne.s32.totalorder %s208, %s224
    %p226 = scmp.eq.s32.totalorder %s22, 0
    %p227 = por %p225, %p226
    %p228 = scmp.le.s32.totalorder 1, %s16
    %p229 = scmp.lt.s32.totalorder %s16, 3
    %p230 = pnand %p228, %p229
    %p231 = pneg %p230
    // Predicated region
    $region9: #{tpu_custom_call.1} parent=5 // pred_check
      _
    $region10: #{tpu_custom_call.1} parent=5 // pred_check_branch
      %233 = sbr.rel (%p230) target = $region12
    $region11: #{tpu_custom_call.1} parent=5 // pred_region
      %s234 = ssub.s32 %s16, 1
      // Predicated region
      $region13: #{tpu_custom_call.1} parent=11 // pred_check
        %p235 = pneg %p89
      $region14: #{tpu_custom_call.1} parent=11 // pred_check_branch
        %237 = sbr.rel (%p235) target = $region16
      $region15: #{tpu_custom_call.1} parent=11 // pred_region
        _
      $region16: #{tpu_custom_call.1} parent=11 // pred_fallthru
        _
      // Predicated region
      $region17: #{tpu_custom_call.1} parent=11 // pred_check
        %p238 = pneg %p110
      $region18: #{tpu_custom_call.1} parent=11 // pred_check_branch
        %240 = sbr.rel (%p238) target = $region20
      $region19: #{tpu_custom_call.1} parent=11 // pred_region
        _
      $region20: #{tpu_custom_call.1} parent=11 // pred_fallthru
        _
      // Predicated region
      $region21: #{tpu_custom_call.1} parent=11 // pred_check
        %p241 = pneg %p131
      $region22: #{tpu_custom_call.1} parent=11 // pred_check_branch
        %243 = sbr.rel (%p241) target = $region24
      $region23: #{tpu_custom_call.1} parent=11 // pred_region
        _
      $region24: #{tpu_custom_call.1} parent=11 // pred_fallthru
        _
      // Predicated region
      $region25: #{tpu_custom_call.1} parent=11 // pred_check
        %p244 = pneg %p152
      $region26: #{tpu_custom_call.1} parent=11 // pred_check_branch
        %246 = sbr.rel (%p244) target = $region28
      $region27: #{tpu_custom_call.1} parent=11 // pred_region
        _
      $region28: #{tpu_custom_call.1} parent=11 // pred_fallthru
        _
      // Predicated region
      $region29: #{tpu_custom_call.1} parent=11 // pred_check
        %p247 = pneg %p173
      $region30: #{tpu_custom_call.1} parent=11 // pred_check_branch
        %249 = sbr.rel (%p247) target = $region32
      $region31: #{tpu_custom_call.1} parent=11 // pred_region
        _
      $region32: #{tpu_custom_call.1} parent=11 // pred_fallthru
        _
      // Predicated region
      $region33: #{tpu_custom_call.1} parent=11 // pred_check
        %p250 = pneg %p194
      $region34: #{tpu_custom_call.1} parent=11 // pred_check_branch
        %252 = sbr.rel (%p250) target = $region36
      $region35: #{tpu_custom_call.1} parent=11 // pred_region
        _
      $region36: #{tpu_custom_call.1} parent=11 // pred_fallthru
        _
    $region12: #{tpu_custom_call.1} parent=5 // pred_fallthru
      _
    %p253 = scmp.lt.s32.totalorder %s16, 2
    // Predicated region
    $region37: #{tpu_custom_call.1} parent=5 // pred_check
      %p254 = pneg %p253
    $region38: #{tpu_custom_call.1} parent=5 // pred_check_branch
      %256 = sbr.rel (%p254) target = $region40
    $region39: #{tpu_custom_call.1} parent=5 // pred_region
      // Predicated region
      $region41: #{tpu_custom_call.1} parent=39 // pred_check
        %p257 = pneg %p36
      $region42: #{tpu_custom_call.1} parent=39 // pred_check_branch
        %259 = sbr.rel (%p257) target = $region44
      $region43: #{tpu_custom_call.1} parent=39 // pred_region
        %s260 = smul.u32 2, %s16
        %p261 = scmp.lt.s32.totalorder %s260, 3
        %s262 = scalar_select %p261, %s260, 3
        %s263 = smul.addr %s262, 8
        %s264 = scalar_lea.vmem %s0, %s263
        %s265 = smul.u32 2, %s16
      $region44: #{tpu_custom_call.1} parent=39 // pred_fallthru
        _
      // Predicated region
      $region45: #{tpu_custom_call.1} parent=39 // pred_check
        %p266 = pneg %p62
      $region46: #{tpu_custom_call.1} parent=39 // pred_check_branch
        %268 = sbr.rel (%p266) target = $region48
      $region47: #{tpu_custom_call.1} parent=39 // pred_region
        %s269 = smul.u32 2, %s16
        %p270 = scmp.lt.s32.totalorder %s269, 3
        %s271 = scalar_select %p270, %s269, 3
        %s272 = smul.addr %s271, 8
        %s273 = scalar_lea.vmem %s1, %s272
        %s274 = smul.u32 2, %s16
      $region48: #{tpu_custom_call.1} parent=39 // pred_fallthru
        _
    $region40: #{tpu_custom_call.1} parent=5 // pred_fallthru
      _
    %p275 = scmp.le.s32.totalorder 1, %s16
    %p276 = scmp.lt.s32.totalorder %s16, 3
    %p277 = pnand %p275, %p276
    %p278 = pneg %p277
    // Predicated region
    $region49: #{tpu_custom_call.1} parent=5 // pred_check
      _
    $region50: #{tpu_custom_call.1} parent=5 // pred_check_branch
      %280 = sbr.rel (%p277) target = $region52
    $region51: #{tpu_custom_call.1} parent=5 // pred_region
      %s281 = ssub.s32 %s16, 1
      %s282 = smul.u32 2, %s21
      %p283 = scmp.lt.s32.totalorder %s282, 3
      %s284 = scalar_select %p283, %s282, 3
      %s285 = smul.addr %s284, 8
      %s286 = scalar_lea.vmem %s0, %s285
      %p287 = pneg %p42
      %p288 = pneg %p39
      %s289 = smul.u32 2, %s21
      %p290 = scmp.lt.s32.totalorder %s289, 3
      %s291 = scalar_select %p290, %s289, 3
      %s292 = smul.addr %s291, 8
      %s293 = scalar_lea.vmem %s1, %s292
      %p294 = pneg %p68
      %p295 = pneg %p65
      %p296 = pneg %p89
      %p297 = pneg %p86
      %p298 = pneg %p110
      %p299 = pneg %p107
      %p300 = pneg %p131
      %p301 = pneg %p128
      %p302 = pneg %p152
      %p303 = pneg %p149
      %p304 = pneg %p173
      %p305 = pneg %p170
      %p306 = pneg %p194
      %p307 = pneg %p191
      %p308 = pneg %p220
      %p309 = pneg %p217
      %s310 = smul.u32 2, %s21
      %p311 = scmp.lt.s32.totalorder %s310, 3
      %s312 = scalar_select %p311, %s310, 3
      %s313 = smul.addr %s312, 8
      %s314 = scalar_lea.vmem %s8, %s313
      %s315 = smul.u32 2, %s21
      %p316 = scmp.lt.s32.totalorder %s315, 3
      %s317 = scalar_select %p316, %s315, 3
      %s318 = smul.addr %s317, 8
      %s319 = scalar_lea.vmem %s0, %s318
      %s320 = smul.u32 2, %s21
      %s321 = smul.u32 2, %s21
      %p322 = scmp.lt.s32.totalorder %s321, 3
      %s323 = scalar_select %p322, %s321, 3
      %s324 = smul.addr %s323, 8
      %s325 = scalar_lea.vmem %s1, %s324
      %s326 = smul.u32 2, %s21
      %s327 = smul.u32 2, %s21
      %p328 = scmp.lt.s32.totalorder %s327, 3
      %s329 = scalar_select %p328, %s327, 3
      %s330 = smul.addr %s329, 8
      %s331 = scalar_lea.vmem %s8, %s330
      %s332 = smul.u32 2, %s21
      %v333 = vld [vmem:[%s319] sm:$0xff]
      %v334 = vld [vmem:[%s319 + $0x8] sm:$0xff]
      %v335 = vld [vmem:[%s325] sm:$0xff]
      %v336 = vld [vmem:[%s325 + $0x8] sm:$0xff]
      %v337 = vmul.f32 %v333, %v335
      %v338 = vmul.f32 %v334, %v336
      %v339 = vld [vmem:[%s2] sm:$0xff]
      %v340 = vld [vmem:[%s2 + $0x8] sm:$0xff]
      %v341 = vld [vmem:[%s3] sm:$0x1]
      %v343 = vperm.slane %v341, 0
      %vm345 = vcmask 130048
      %v347 = vsel %vm345, %v337, 0
      %v350 = vsel %vm345, %v338, 0
      %352 = vmatpush.msra.mxu0 0.0
      %353 = vmatpush.msra.mxu0 0.0
      %354 = vmatpush.msra.mxu0 0.0
      %355 = vmatpush.msra.mxu0 0.0
      %356 = vmatpush.msra.mxu0 0.0
      %357 = vmatpush.msra.mxu0 0.0
      %358 = vmatpush.msra.mxu0 0.0
      %359 = vmatpush.msra.mxu0 0.0
      %360 = vmatpush.msra.mxu0 0.0
      %361 = vmatpush.msra.mxu0 0.0
      %362 = vmatpush.msra.mxu0 0.0
      %363 = vmatpush.msra.mxu0 0.0
      %364 = vmatpush.msra.mxu0 0.0
      %365 = vmatpush.msra.mxu0 0.0
      %366 = vmatpush.msra.mxu0 %v340
      %367 = vmatpush.msra.mxu0 %v339
      %368 = vmatmul.f32.gmra.mxu0 %v347
      %v369 = vpop.f32.mrf.mxu0
      %v370 = vadd.f32 %v343, %v369
      %371 = vmatmul.f32.gmra.mxu0 %v350
      %v372 = vpop.f32.mrf.mxu0
      %v373 = vadd.f32 %v343, %v372
      %374 = vdwg.mxu0
      %v375 = vmax.f32 %v370, 0.0
      %v376 = vmax.f32 %v373, 0.0
      %v377 = vld [vmem:[%s4] sm:$0xff]
      %v378 = vld [vmem:[%s4 + $0x8] sm:$0xff]
      %v379 = vld [vmem:[%s4 + $0x10] sm:$0xff]
      %v380 = vld [vmem:[%s4 + $0x18] sm:$0xff]
      %v381 = vld [vmem:[%s5] sm:$0x1]
      %v383 = vperm.slane %v381, 0
      %vm385 = vcmask 261120
      %v387 = vsel %vm385, %v375, 0
      %v390 = vsel %vm385, %v376, 0
      %392 = vmatpush.msra.mxu0 0.0
      %393 = vmatpush.msra.mxu0 0.0
      %394 = vmatpush.msra.mxu0 0.0
      %395 = vmatpush.msra.mxu0 0.0
      %396 = vmatpush.msra.mxu0 0.0
      %397 = vmatpush.msra.mxu0 0.0
      %398 = vmatpush.msra.mxu0 0.0
      %399 = vmatpush.msra.mxu0 0.0
      %400 = vmatpush.msra.mxu0 0.0
      %401 = vmatpush.msra.mxu0 0.0
      %402 = vmatpush.msra.mxu0 0.0
      %403 = vmatpush.msra.mxu0 0.0
      %404 = vmatpush.msra.mxu0 %v380
      %405 = vmatpush.msra.mxu0 %v379
      %406 = vmatpush.msra.mxu0 %v378
      %407 = vmatpush.msra.mxu0 %v377
      %408 = vmatmul.f32.gmra.mxu0 %v387
      %v409 = vpop.f32.mrf.mxu0
      %v410 = vadd.f32 %v383, %v409
      %411 = vmatmul.f32.gmra.mxu0 %v390
      %v412 = vpop.f32.mrf.mxu0
      %v413 = vadd.f32 %v383, %v412
      %414 = vdwg.mxu0
      %v415 = vmax.f32 %v410, 0.0
      %v416 = vmax.f32 %v413, 0.0
      %v417 = vld [vmem:[%s6] sm:$0xff]
      %v418 = vld [vmem:[%s6 + $0x8] sm:$0xff]
      %v419 = vld [vmem:[%s6 + $0x10] sm:$0xff]
      %v420 = vld [vmem:[%s6 + $0x18] sm:$0xff]
      %v421 = vld [vmem:[#allocation2] sm:$0x1]
      %v423 = vperm.slane %v421, 0
      %v426 = vsel %vm385, %v415, 0
      %v429 = vsel %vm385, %v416, 0
      %431 = vmatpush.msra.mxu0 0.0
      %432 = vmatpush.msra.mxu0 0.0
      %433 = vmatpush.msra.mxu0 0.0
      %434 = vmatpush.msra.mxu0 0.0
      %435 = vmatpush.msra.mxu0 0.0
      %436 = vmatpush.msra.mxu0 0.0
      %437 = vmatpush.msra.mxu0 0.0
      %438 = vmatpush.msra.mxu0 0.0
      %439 = vmatpush.msra.mxu0 0.0
      %440 = vmatpush.msra.mxu0 0.0
      %441 = vmatpush.msra.mxu0 0.0
      %442 = vmatpush.msra.mxu0 0.0
      %443 = vmatpush.msra.mxu0 %v420
      %444 = vmatpush.msra.mxu0 %v419
      %445 = vmatpush.msra.mxu0 %v418
      %446 = vmatpush.msra.mxu0 %v417
      %447 = vmatmul.f32.gmra.mxu0 %v426
      %v448 = vpop.f32.mrf.mxu0
      %v449 = vadd.f32 %v423, %v448
      %450 = vmatmul.f32.gmra.mxu0 %v429
      %v451 = vpop.f32.mrf.mxu0
      %v452 = vadd.f32 %v423, %v451
      %453 = vdwg.mxu0
      %v454 = vsub.f32 0.0, %v449
      %v455 = vsub.f32 0.0, %v452
      %v456 = vmul.f32 %v454, 1.442695
      %v457 = vpow.pop %v456
      %v458 = vmul.f32 %v455, 1.442695
      %v459 = vpow.pop %v458
      %v460 = vadd.f32 %v457, 1.0
      %v461 = vadd.f32 %v459, 1.0
      %v462 = vrcp.pop %v460
      %v463 = vrcp.pop %v461
      %vm464 = vcmask 7168
      %465 = vst.msk [vmem:[%s331] sm:$0xff] %vm464, %v462
      %466 = vst.msk [vmem:[%s331 + $0x8] sm:$0xff] %vm464, %v463
      %s467 = smul.u32 2, %s21
      %p468 = scmp.lt.s32.totalorder %s467, 3
      %s469 = scalar_select %p468, %s467, 3
      %s470 = smul.addr %s469, 8
      %s471 = scalar_lea.vmem %s8, %s470
      // Predicated region
      $region53: #{tpu_custom_call.1} parent=51 // pred_check
        %p472 = pneg %p217
      $region54: #{tpu_custom_call.1} parent=51 // pred_check_branch
        %474 = sbr.rel (%p472) target = $region56
      $region55: #{tpu_custom_call.1} parent=51 // pred_region
        %s475 = smul.u32 2, %s21
      $region56: #{tpu_custom_call.1} parent=51 // pred_fallthru
        _
    $region52: #{tpu_custom_call.1} parent=5 // pred_fallthru
      _
    %p476 = scmp.le.s32.totalorder 2, %s16
    // Predicated region
    $region57: #{tpu_custom_call.1} parent=5 // pred_check
      %p477 = pneg %p476
    $region58: #{tpu_custom_call.1} parent=5 // pred_check_branch
      %479 = sbr.rel (%p477) target = $region60
    $region59: #{tpu_custom_call.1} parent=5 // pred_region
      %s480 = ssub.s32 %s16, 2
      // Predicated region
      $region61: #{tpu_custom_call.1} parent=59 // pred_check
        %p481 = pneg %p223
      $region62: #{tpu_custom_call.1} parent=59 // pred_check_branch
        %483 = sbr.rel (%p481) target = $region64
      $region63: #{tpu_custom_call.1} parent=59 // pred_region
        %s484 = smul.u32 2, %s22
        %p485 = scmp.lt.s32.totalorder %s484, 3
        %s486 = scalar_select %p485, %s484, 3
        %s487 = smul.addr %s486, 8
        %s488 = scalar_lea.vmem %s8, %s487
      $region64: #{tpu_custom_call.1} parent=59 // pred_fallthru
        _
    $region60: #{tpu_custom_call.1} parent=5 // pred_fallthru
      _
  $region6: #{tpu_custom_call.1} parent=0 // loop_footer
    %s20 = sadd.s32 1, %s16
  $region7: #{tpu_custom_call.1} parent=0 // loop_footer_branch
    %15 = sbr.rel target = $region3
  $region8: #{tpu_custom_call.1} parent=0 // loop_exit
    _

</llo_original>
